<compile_context>
chip_gen: v5e
topology: v5e:2x2
jax: 0.10.0
libtpu: 0.0.40
codegen_flags: <defaults>
</compile_context>

<pallas_src>
import jax
import jax.numpy as jnp
from jax.experimental import pallas as pl
from jax.experimental.pallas import tpu as pltpu


def mlp_kernel(x_ref, w1_ref, b1_ref, w2_ref, b2_ref, w3_ref, b3_ref, o_ref):
    x = x_ref[...]                                            # (TB, D), compute dtype

    # Layer 1: MXU matmul with f32 accumulation; bias + ReLU epilogue in f32.
    h1 = jnp.dot(x, w1_ref[...], preferred_element_type=jnp.float32) + b1_ref[...]
    h1 = jnp.maximum(h1, 0.0)                                 # (TB, 64) f32

    # Layer 2: cast activations to the weight dtype (bf16 path) to feed the MXU.
    h2 = jnp.dot(h1.astype(w2_ref.dtype), w2_ref[...],
                 preferred_element_type=jnp.float32) + b2_ref[...]
    h2 = jnp.maximum(h2, 0.0)                                 # (TB, 32) f32

    # Layer 3 (K=32 -> N=1): VPU multiply + cross-lane reduce instead of a
    # 1-output-lane MXU pass. Result is stored lane-dense as a (1, TB) row.
    out = jnp.sum(h2 * w3_ref[...], axis=-1)                  # (TB,) f32
    o_ref[...] = (out[None, :] + b3_ref[...]).astype(o_ref.dtype)


def regression_model_forward(x, params, *, compute_dtype=jnp.float32, tb_max=1024):
    """x: (B, input_dim); params: dict of weights/biases (f32). Returns (B, 1) f32."""
    assert tb_max % 128 == 0, "tile must keep the lane axis a multiple of 128"
    f32 = jnp.float32
    B, input_dim = x.shape

    # Operand prep: MXU operands in compute_dtype; epilogue params stay f32.
    xc = x.astype(compute_dtype)
    w1 = params["w1"].astype(compute_dtype)
    w2 = params["w2"].astype(compute_dtype)
    w3 = params["w3"].reshape(1, -1).astype(f32)              # (1, 32) row for VPU path
    b1 = params["b1"].astype(f32)
    b2 = params["b2"].astype(f32)
    b3 = params["b3"].astype(f32)

    # Batch tiling: pad B to a sublane multiple, pick the batch tile, pad to a
    # whole number of tiles (padded rows compute garbage and are sliced away).
    b_pad8 = -(-B // 8) * 8
    tb = b_pad8 if b_pad8 <= tb_max else tb_max
    num_tiles = -(-b_pad8 // tb)
    b_pad = num_tiles * tb
    if b_pad != B:
        xc = jnp.pad(xc, ((0, b_pad - B), (0, 0)))

    dsize = jnp.dtype(compute_dtype).itemsize
    weight_bytes = sum(int(a.size) * a.dtype.itemsize for a in (w1, b1, w2, b2, w3, b3))
    cost = pl.CostEstimate(
        flops=2 * b_pad * (input_dim * 64 + 64 * 32 + 32),
        transcendentals=0,
        bytes_accessed=b_pad * input_dim * dsize + weight_bytes + b_pad * 4,
    )

    # Weights/biases: full-array blocks with a constant index_map -> loaded once,
    # resident in VMEM across all grid steps.
    def const(a):
        return pl.BlockSpec(a.shape, lambda i: (0,) * a.ndim)

    out = pl.pallas_call(
        mlp_kernel,
        out_shape=jax.ShapeDtypeStruct((num_tiles, tb), f32),
        grid=(num_tiles,),
        in_specs=[
            pl.BlockSpec((tb, input_dim), lambda i: (i, 0)),  # x: tiled over batch
            const(w1), const(b1), const(w2), const(b2), const(w3), const(b3),
        ],
        out_specs=pl.BlockSpec((1, tb), lambda i: (i, 0)),    # lane-dense output slab
        compiler_params=pltpu.CompilerParams(
            dimension_semantics=("parallel",),
            vmem_limit_bytes=32 * 1024 * 1024,
        ),
        cost_estimate=cost,
    )(xc, w1, b1, w2, b2, w3, b3)

    return out.reshape(b_pad, 1)[:B]


def init_params(key, input_dim):
    """Deterministic init mimicking nn.Linear shapes (stored as (in, out))."""
    ks = jax.random.split(key, 6)

    def linear(kw, kb, fan_in, fan_out):
        bound = 1.0 / jnp.sqrt(fan_in)
        w = jax.random.uniform(kw, (fan_in, fan_out), jnp.float32, -bound, bound)
        b = jax.random.uniform(kb, (1, fan_out), jnp.float32, -bound, bound)
        return w, b

    w1, b1 = linear(ks[0], ks[1], input_dim, 64)
    w2, b2 = linear(ks[2], ks[3], 64, 32)
    w3, b3 = linear(ks[4], ks[5], 32, 1)
    return {"w1": w1, "b1": b1, "w2": w2, "b2": b2, "w3": w3, "b3": b3}


def reference_forward(x, p, compute_dtype=jnp.float32):
    """Pure-JAX reference matching the kernel's dtype semantics (HIGHEST precision)."""
    f32 = jnp.float32
    hp = jax.lax.Precision.HIGHEST
    cast = lambda a: a.astype(compute_dtype).astype(f32)
    h1 = jnp.maximum(jnp.dot(cast(x), cast(p["w1"]), precision=hp)
                     + p["b1"].astype(f32), 0.0)
    h2 = jnp.maximum(jnp.dot(cast(h1), cast(p["w2"]), precision=hp)
                     + p["b2"].astype(f32), 0.0)
    return jnp.dot(h2, p["w3"].astype(f32), precision=hp) + p["b3"].astype(f32)


if __name__ == "__main__":
    key = jax.random.PRNGKey(0)
    k_params, k_x1, k_x2 = jax.random.split(key, 3)

    input_dim = 32
    params = init_params(k_params, input_dim)

    # 1) Small batch: single-tile path, f32.
    x_small = jax.random.normal(k_x1, (8, input_dim), jnp.float32)
    out_small = jax.block_until_ready(regression_model_forward(x_small, params))
    ref_small = reference_forward(x_small, params)
    assert out_small.shape == (8, 1), out_small.shape
    assert jnp.allclose(out_small, ref_small, atol=1e-2, rtol=1e-2), "f32 small mismatch"

    # 2) Larger batch: exercises the pipelined batch grid (multiple tiles) + padding.
    x_big = jax.random.normal(k_x2, (300, input_dim), jnp.float32)
    out_big = jax.block_until_ready(
        regression_model_forward(x_big, params, tb_max=128))
    ref_big = reference_forward(x_big, params)
    assert out_big.shape == (300, 1), out_big.shape
    assert jnp.allclose(out_big, ref_big, atol=1e-2, rtol=1e-2), "f32 tiled mismatch"

    # 3) bf16 compute path (halves x DMA bytes, bf16 MXU on v6e/v7x), f32 accumulate.
    out_bf16 = jax.block_until_ready(
        regression_model_forward(x_big, params, compute_dtype=jnp.bfloat16, tb_max=128))
    ref_bf16 = reference_forward(x_big, params, compute_dtype=jnp.bfloat16)
    assert out_bf16.shape == (300, 1), out_bf16.shape
    assert jnp.allclose(out_bf16, ref_bf16, atol=5e-2, rtol=5e-2), "bf16 mismatch"

    print("KERNEL_OK")
</pallas_src>

<mosaic_0001>
module attributes {stable_mosaic.version = 11 : i64} {
  func.func @mlp_kernel(%arg0: i32, %arg1: memref<8x32xf32, #tpu.memory_space<vmem>>, %arg2: memref<32x64xf32, #tpu.memory_space<vmem>>, %arg3: memref<1x64xf32, #tpu.memory_space<vmem>>, %arg4: memref<64x32xf32, #tpu.memory_space<vmem>>, %arg5: memref<1x32xf32, #tpu.memory_space<vmem>>, %arg6: memref<1x32xf32, #tpu.memory_space<vmem>>, %arg7: memref<1x1xf32, #tpu.memory_space<vmem>>, %arg8: memref<1x8xf32, #tpu.memory_space<vmem>>) attributes {dimension_semantics = [#tpu.dimension_semantics<parallel>], iteration_bounds = array<i64: 1>, scalar_prefetch = 0 : i64, scratch_operands = 0 : i64, tpu.core_type = #tpu.core_type<tc>, window_params = [{transform_indices = @transform_0, window_bounds = array<i64: 8, 32>}, {pipeline_mode = #tpu.pipeline_mode<synchronous>, transform_indices = @transform_1, window_bounds = array<i64: 32, 64>}, {pipeline_mode = #tpu.pipeline_mode<synchronous>, transform_indices = @transform_2, window_bounds = array<i64: 1, 64>}, {pipeline_mode = #tpu.pipeline_mode<synchronous>, transform_indices = @transform_3, window_bounds = array<i64: 64, 32>}, {pipeline_mode = #tpu.pipeline_mode<synchronous>, transform_indices = @transform_4, window_bounds = array<i64: 1, 32>}, {pipeline_mode = #tpu.pipeline_mode<synchronous>, transform_indices = @transform_5, window_bounds = array<i64: 1, 32>}, {pipeline_mode = #tpu.pipeline_mode<synchronous>, transform_indices = @transform_6, window_bounds = array<i64: 1, 1>}, {transform_indices = @transform_7, window_bounds = array<i64: 1, 8>}]} {
    %c0 = arith.constant 0 : index
    %c0_0 = arith.constant 0 : index
    %0 = vector.load %arg1[%c0, %c0_0] : memref<8x32xf32, #tpu.memory_space<vmem>>, vector<8x32xf32>
    %c0_1 = arith.constant 0 : index
    %c0_2 = arith.constant 0 : index
    %1 = vector.load %arg2[%c0_1, %c0_2] : memref<32x64xf32, #tpu.memory_space<vmem>>, vector<32x64xf32>
    %cst = arith.constant dense<0.000000e+00> : vector<8x64xf32>
    %2 = tpu.matmul %0, %1, %cst {dimension_numbers = #tpu.dot_dimension_numbers<[1], [0], [0], [1], [0, 0, 1, 1], [], []>} : vector<8x32xf32>, vector<32x64xf32>, vector<8x64xf32> -> vector<8x64xf32>
    %c0_3 = arith.constant 0 : index
    %c0_4 = arith.constant 0 : index
    %3 = vector.load %arg3[%c0_3, %c0_4] : memref<1x64xf32, #tpu.memory_space<vmem>>, vector<1x64xf32>
    %4 = vector.broadcast %3 : vector<1x64xf32> to vector<8x64xf32>
    %5 = arith.addf %2, %4 : vector<8x64xf32>
    %cst_5 = arith.constant 0.000000e+00 : f32
    %6 = vector.broadcast %cst_5 : f32 to vector<8x64xf32>
    %7 = arith.maximumf %5, %6 : vector<8x64xf32>
    %c0_6 = arith.constant 0 : index
    %c0_7 = arith.constant 0 : index
    %8 = vector.load %arg4[%c0_6, %c0_7] : memref<64x32xf32, #tpu.memory_space<vmem>>, vector<64x32xf32>
    %cst_8 = arith.constant dense<0.000000e+00> : vector<8x32xf32>
    %9 = tpu.matmul %7, %8, %cst_8 {dimension_numbers = #tpu.dot_dimension_numbers<[1], [0], [0], [1], [0, 0, 1, 1], [], []>} : vector<8x64xf32>, vector<64x32xf32>, vector<8x32xf32> -> vector<8x32xf32>
    %c0_9 = arith.constant 0 : index
    %c0_10 = arith.constant 0 : index
    %10 = vector.load %arg5[%c0_9, %c0_10] : memref<1x32xf32, #tpu.memory_space<vmem>>, vector<1x32xf32>
    %11 = vector.broadcast %10 : vector<1x32xf32> to vector<8x32xf32>
    %12 = arith.addf %9, %11 : vector<8x32xf32>
    %cst_11 = arith.constant 0.000000e+00 : f32
    %13 = vector.broadcast %cst_11 : f32 to vector<8x32xf32>
    %14 = arith.maximumf %12, %13 : vector<8x32xf32>
    %c0_12 = arith.constant 0 : index
    %c0_13 = arith.constant 0 : index
    %15 = vector.load %arg6[%c0_12, %c0_13] : memref<1x32xf32, #tpu.memory_space<vmem>>, vector<1x32xf32>
    %16 = vector.broadcast %15 : vector<1x32xf32> to vector<8x32xf32>
    %17 = arith.mulf %14, %16 : vector<8x32xf32>
    %cst_14 = arith.constant dense<0.000000e+00> : vector<8xf32>
    %18 = vector.multi_reduction <add>, %17, %cst_14 [1] : vector<8x32xf32> to vector<8xf32>
    %19 = vector.shape_cast %18 : vector<8xf32> to vector<1x8xf32>
    %c0_15 = arith.constant 0 : index
    %c0_16 = arith.constant 0 : index
    %20 = vector.load %arg7[%c0_15, %c0_16] : memref<1x1xf32, #tpu.memory_space<vmem>>, vector<1x1xf32>
    %21 = vector.broadcast %20 : vector<1x1xf32> to vector<1x8xf32>
    %22 = arith.addf %19, %21 : vector<1x8xf32>
    %c0_17 = arith.constant 0 : index
    %c0_18 = arith.constant 0 : index
    %23 = vector.load %arg8[%c0_17, %c0_18] : memref<1x8xf32, #tpu.memory_space<vmem>>, vector<1x8xf32>
    tpu.vector_store %arg8[%c0_17, %c0_18], %22 {strides = array<i32>} : memref<1x8xf32, #tpu.memory_space<vmem>>, vector<1x8xf32>,
    return
  }
  func.func @transform_0(%arg0: i32) -> (i32, i32) {
    %c0_i32 = arith.constant 0 : i32
    %c0_i32_0 = arith.constant 0 : i32
    return %arg0, %c0_i32 : i32, i32
  }
  func.func @transform_1(%arg0: i32) -> (i32, i32) {
    %c0_i32 = arith.constant 0 : i32
    %c0_i32_0 = arith.constant 0 : i32
    %c0_i32_1 = arith.constant 0 : i32
    return %c0_i32, %c0_i32_0 : i32, i32
  }
  func.func @transform_2(%arg0: i32) -> (i32, i32) {
    %c0_i32 = arith.constant 0 : i32
    %c0_i32_0 = arith.constant 0 : i32
    %c0_i32_1 = arith.constant 0 : i32
    return %c0_i32, %c0_i32_0 : i32, i32
  }
  func.func @transform_3(%arg0: i32) -> (i32, i32) {
    %c0_i32 = arith.constant 0 : i32
    %c0_i32_0 = arith.constant 0 : i32
    %c0_i32_1 = arith.constant 0 : i32
    return %c0_i32, %c0_i32_0 : i32, i32
  }
  func.func @transform_4(%arg0: i32) -> (i32, i32) {
    %c0_i32 = arith.constant 0 : i32
    %c0_i32_0 = arith.constant 0 : i32
    %c0_i32_1 = arith.constant 0 : i32
    return %c0_i32, %c0_i32_0 : i32, i32
  }
  func.func @transform_5(%arg0: i32) -> (i32, i32) {
    %c0_i32 = arith.constant 0 : i32
    %c0_i32_0 = arith.constant 0 : i32
    %c0_i32_1 = arith.constant 0 : i32
    return %c0_i32, %c0_i32_0 : i32, i32
  }
  func.func @transform_6(%arg0: i32) -> (i32, i32) {
    %c0_i32 = arith.constant 0 : i32
    %c0_i32_0 = arith.constant 0 : i32
    %c0_i32_1 = arith.constant 0 : i32
    return %c0_i32, %c0_i32_0 : i32, i32
  }
  func.func @transform_7(%arg0: i32) -> (i32, i32) {
    %c0_i32 = arith.constant 0 : i32
    %c0_i32_0 = arith.constant 0 : i32
    return %arg0, %c0_i32 : i32, i32
  }
}

</mosaic_0001>

<llo_original>
// kernel: tpu_custom_call.1
$region0: #{tpu_custom_call.1}
  #allocation0 [shape = 'u32[]', space=smem, size = 0x4, offset = 0x4, fixed_abs, tag = 'smem constant byte address 0x4 - core index']
  #allocation1 [shape = 'u32[72,128]{1,0:T(1,128)}', space=vmem, size = 0x9000, scoped, tag = 'internal scratch']
  #allocation2 [shape = 'f32[1,1]{1,0:T(1,128)S(1)}', space=vmem, size = 0x200, scoped, tag = 'scoped memory for tpu_custom_call.1']
  %s0 = inlined_call_operand.vmem [shape: f32[8,32], index: 0, kind: input, shape index: {}]
  %s1 = inlined_call_operand.vmem [shape: f32[32,64], index: 1, kind: input, shape index: {}]
  %s2 = inlined_call_operand.vmem [shape: f32[1,64], index: 2, kind: input, shape index: {}]
  %s3 = inlined_call_operand.vmem [shape: f32[64,32], index: 3, kind: input, shape index: {}]
  %s4 = inlined_call_operand.vmem [shape: f32[1,32], index: 4, kind: input, shape index: {}]
  %s5 = inlined_call_operand.vmem [shape: f32[1,32], index: 5, kind: input, shape index: {}]
  %s6 = inlined_call_operand.<no memory space> [shape: f32[1,1], index: 6, kind: input, shape index: {}]
  %s7 = inlined_call_operand.hbm [shape: f32[1,8], index: 7, kind: output, shape index: {}]
  %s8 = sld [smem:[#allocation0]]
  $region38: #{tpu_custom_call.1} parent=0
    _
  %s10 = ssub.s32 1, %s8
  %s11 = scalar_select 0, %s10, %s8
  %v12 = vstv %s6
  %13 = vst [vmem:[#allocation2] sm:$0x1] %v12
  $region1: #{tpu_custom_call.1} parent=0
    #allocation3 [shape = 'u8[512]{0}', space=vmem, size = 0x400, scoped, tag = 'output window, operand 0, single buffered']
    #allocation4 [shape = 's32[1]{0}', space=sflag, size = 0x4, scoped, tag = 'scoped memory for tpu_custom_call.1']
    %14 = vsyncpa [#allocation4], 0
    // Predicated region
    $region2: #{tpu_custom_call.1} parent=1 // pred_check
      _
    $region3: #{tpu_custom_call.1} parent=1 // pred_check_branch
      %16 = sbr.rel (0) target = $region5
    $region4: #{tpu_custom_call.1} parent=1 // pred_region
      _
    $region5: #{tpu_custom_call.1} parent=1 // pred_fallthru
      _
    // Predicated region
    $region6: #{tpu_custom_call.1} parent=1 // pred_check
      _
    $region7: #{tpu_custom_call.1} parent=1 // pred_check_branch
      %18 = sbr.rel (0) target = $region9
    $region8: #{tpu_custom_call.1} parent=1 // pred_region
      _
    $region9: #{tpu_custom_call.1} parent=1 // pred_fallthru
      _
    // Predicated region
    $region10: #{tpu_custom_call.1} parent=1 // pred_check
      _
    $region11: #{tpu_custom_call.1} parent=1 // pred_check_branch
      %20 = sbr.rel (0) target = $region13
    $region12: #{tpu_custom_call.1} parent=1 // pred_region
      _
    $region13: #{tpu_custom_call.1} parent=1 // pred_fallthru
      _
    // Predicated region
    $region14: #{tpu_custom_call.1} parent=1 // pred_check
      _
    $region15: #{tpu_custom_call.1} parent=1 // pred_check_branch
      %22 = sbr.rel (0) target = $region17
    $region16: #{tpu_custom_call.1} parent=1 // pred_region
      _
    $region17: #{tpu_custom_call.1} parent=1 // pred_fallthru
      _
    // Predicated region
    $region18: #{tpu_custom_call.1} parent=1 // pred_check
      _
    $region19: #{tpu_custom_call.1} parent=1 // pred_check_branch
      %24 = sbr.rel (0) target = $region21
    $region20: #{tpu_custom_call.1} parent=1 // pred_region
      _
    $region21: #{tpu_custom_call.1} parent=1 // pred_fallthru
      _
    // Predicated region
    $region22: #{tpu_custom_call.1} parent=1 // pred_check
      _
    $region23: #{tpu_custom_call.1} parent=1 // pred_check_branch
      %26 = sbr.rel (0) target = $region25
    $region24: #{tpu_custom_call.1} parent=1 // pred_region
      _
    $region25: #{tpu_custom_call.1} parent=1 // pred_fallthru
      _
    // Predicated region
    $region26: #{tpu_custom_call.1} parent=1 // pred_check
      _
    $region27: #{tpu_custom_call.1} parent=1 // pred_check_branch
      %28 = sbr.rel (0) target = $region29
    $region28: #{tpu_custom_call.1} parent=1 // pred_region
      _
    $region29: #{tpu_custom_call.1} parent=1 // pred_fallthru
      _
    %v29 = vld [vmem:[%s0] sm:$0xff]
    %v30 = vld [vmem:[%s1] sm:$0xff]
    %v31 = vld [vmem:[%s1 + $0x8] sm:$0xff]
    %v32 = vld [vmem:[%s1 + $0x10] sm:$0xff]
    %v33 = vld [vmem:[%s1 + $0x18] sm:$0xff]
    %v34 = vld [vmem:[%s2] sm:$0x1]
    %v36 = vperm.slane %v34, 0
    %vm38 = vcmask 261120
    %v40 = vsel %vm38, %v29, 0
    %42 = vmatpush.msra.mxu0 0.0
    %43 = vmatpush.msra.mxu0 0.0
    %44 = vmatpush.msra.mxu0 0.0
    %45 = vmatpush.msra.mxu0 0.0
    %46 = vmatpush.msra.mxu0 0.0
    %47 = vmatpush.msra.mxu0 0.0
    %48 = vmatpush.msra.mxu0 0.0
    %49 = vmatpush.msra.mxu0 0.0
    %50 = vmatpush.msra.mxu0 0.0
    %51 = vmatpush.msra.mxu0 0.0
    %52 = vmatpush.msra.mxu0 0.0
    %53 = vmatpush.msra.mxu0 0.0
    %54 = vmatpush.msra.mxu0 %v33
    %55 = vmatpush.msra.mxu0 %v32
    %56 = vmatpush.msra.mxu0 %v31
    %57 = vmatpush.msra.mxu0 %v30
    %58 = vmatmul.f32.gmra.mxu0 %v40
    %v59 = vpop.f32.mrf.mxu0
    %v60 = vadd.f32 %v36, %v59
    %61 = vdwg.mxu0
    %v62 = vmax.f32 %v60, 0.0
    %v63 = vld [vmem:[%s3] sm:$0xff]
    %v64 = vld [vmem:[%s3 + $0x8] sm:$0xff]
    %v65 = vld [vmem:[%s3 + $0x10] sm:$0xff]
    %v66 = vld [vmem:[%s3 + $0x18] sm:$0xff]
    %v67 = vld [vmem:[%s3 + $0x20] sm:$0xff]
    %v68 = vld [vmem:[%s3 + $0x28] sm:$0xff]
    %v69 = vld [vmem:[%s3 + $0x30] sm:$0xff]
    %v70 = vld [vmem:[%s3 + $0x38] sm:$0xff]
    %v71 = vld [vmem:[%s4] sm:$0x1]
    %v73 = vperm.slane %v71, 0
    %vm75 = vcmask 523264
    %v77 = vsel %vm75, %v62, 0
    %79 = vmatpush.msra.mxu0 0.0
    %80 = vmatpush.msra.mxu0 0.0
    %81 = vmatpush.msra.mxu0 0.0
    %82 = vmatpush.msra.mxu0 0.0
    %83 = vmatpush.msra.mxu0 0.0
    %84 = vmatpush.msra.mxu0 0.0
    %85 = vmatpush.msra.mxu0 0.0
    %86 = vmatpush.msra.mxu0 0.0
    %87 = vmatpush.msra.mxu0 %v70
    %88 = vmatpush.msra.mxu0 %v69
    %89 = vmatpush.msra.mxu0 %v68
    %90 = vmatpush.msra.mxu0 %v67
    %91 = vmatpush.msra.mxu0 %v66
    %92 = vmatpush.msra.mxu0 %v65
    %93 = vmatpush.msra.mxu0 %v64
    %94 = vmatpush.msra.mxu0 %v63
    %95 = vmatmul.f32.gmra.mxu0 %v77
    %v96 = vpop.f32.mrf.mxu0
    %v97 = vadd.f32 %v73, %v96
    %98 = vdwg.mxu0
    %v99 = vmax.f32 %v97, 0.0
    %v100 = vld [vmem:[%s5] sm:$0x1]
    %v102 = vperm.slane %v100, 0
    %v104 = vmul.f32 %v99, %v102
    %v105 = vsel %vm38, %v104, 0.0
    %106 = vadd.xlane.f32.xlu0 %v105
    %v107 = vpop.xlane.xlu0 %106
    %v108 = vld [vmem:[#allocation2] sm:$0x1]
    %110 = vset.pattern.permute.xlu0 0
    %111 = vperm.xlu0 %110, %v108
    %v112 = vpop.permute.xlu0 %111
    %v114 = vperm.slane %v112, 0
    %v115 = vadd.f32 %v107, %v114
    %v117 = vlaneseq
    %v118 = vand.u32 %v117, 127
    %v119 = vperm.slane %v115, %v118
    %vm121 = vcmask 57344
    %122 = vst.msk [vmem:[#allocation3] sm:$0x1] %vm121, %v119
    // Predicated region
    $region30: #{tpu_custom_call.1} parent=1 // pred_check
      _
    $region31: #{tpu_custom_call.1} parent=1 // pred_check_branch
      %124 = sbr.rel (0) target = $region33
    $region32: #{tpu_custom_call.1} parent=1 // pred_region
      %126 = vsyncadd [#allocation4], 0
      %s128 = sshll.u32 [#allocation3], 4
      %s129 = int_to_ptr.vmem [resolvable:$true] %s128
      %s130 = sshll.u32 %s7, 4
      %s131 = int_to_ptr.hbm [resolvable:$true] %s130
      %133 = dma.vmem_to_hbm [thread:$0]  %s129, 16, %s131, [#allocation4]
    $region33: #{tpu_custom_call.1} parent=1 // pred_fallthru
      _
    // Predicated region
    $region34: #{tpu_custom_call.1} parent=1 // pred_check
      _
    $region35: #{tpu_custom_call.1} parent=1 // pred_check_branch
      %135 = sbr.rel (0) target = $region37
    $region36: #{tpu_custom_call.1} parent=1 // pred_region
      %137 = dma.done [#allocation4], 16
    $region37: #{tpu_custom_call.1} parent=1 // pred_fallthru
      _
    %138 = vsyncpa [#allocation4], 1

</llo_original>
